<compile_context>
chip_gen: v7x
topology: tpu7x:2x2x1
jax: 0.10.0
libtpu: 0.0.40
codegen_flags: <defaults>
</compile_context>

<pallas_src>
import jax
import jax.numpy as jnp
from jax.experimental import pallas as pl
from jax.experimental.pallas import tpu as pltpu

RESCALE = 1.0
FACTOR = 60.0
INV_FACTOR = RESCALE / FACTOR          # folded clamp-scale / factor constant
NOISE_LEVEL = 1.0
CLAMP_LO = -2.0 ** 15
CLAMP_HI = 2.0 ** 15 - 1.0

LANE = 128                             # TPU lane width
SUBLANE = 8                            # f32 sublane count per vreg
_TILE_BYTES = 2 << 20                  # ~2 MiB per operand per grid step


def _cdiv(a, b):
    return -(-a // b)


def _round_up(a, b):
    return _cdiv(a, b) * b


def _vmem_capacity_bytes():
    """Generation-aware VMEM capacity (v5e/v6e: 128 MiB, v7x: 64 MiB/TC)."""
    try:
        info = pltpu.get_tpu_info()
        for attr in ("vmem_capacity_bytes", "vmem_bytes", "vmem_size_bytes"):
            v = getattr(info, attr, None)
            if v:
                return max(int(v), 32 << 20)
    except Exception:
        pass
    return 64 << 20                    # conservative default (v7x per-core)


# ---------------------------------------------------------------------------
# Fused single-pass path: whole array resident in VMEM (gridless), global
# energy reductions fused with the elementwise epilogue (16 B/elem HBM).
# ---------------------------------------------------------------------------
def _fused_kernel(x_ref, delta_ref, rnd_ref, o_ref):
    x = x_ref[...].astype(jnp.float32)
    rnd = rnd_ref[...].astype(jnp.float32)

    # clamp(delta, -2000, 2000) * rescale / factor  ==  clamp(...) * INV_FACTOR
    new_input = jnp.clip(delta_ref[...].astype(jnp.float32),
                         -2000.0, 2000.0) * INV_FACTOR + x

    # exact division (approx reciprocal would break ~1e-5 tolerances at |x|~3e4)
    scale = NOISE_LEVEL * jnp.sum(x * x) / jnp.sum(rnd * rnd)

    o_ref[...] = jnp.clip(new_input + rnd * scale, CLAMP_LO, CLAMP_HI)


def _fused_call(x2, d2, r2, vmem_limit):
    vmem = pl.BlockSpec(memory_space=pltpu.MemorySpace.VMEM)
    return pl.pallas_call(
        _fused_kernel,
        out_shape=jax.ShapeDtypeStruct(x2.shape, jnp.float32),
        in_specs=[vmem, vmem, vmem],
        out_specs=vmem,
        compiler_params=pltpu.CompilerParams(vmem_limit_bytes=int(vmem_limit)),
    )(x2, d2, r2)


# ---------------------------------------------------------------------------
# Two-pass path: energies reduced in the wrapper (plain jnp.sum on the
# original arrays), then a tiled, purely elementwise kernel streams ~2 MiB
# blocks; the precomputed scalar scale lives in SMEM.
# (Kept as a plain SMEM operand rather than PrefetchScalarGridSpec: proven to
#  compile/run cleanly; the prefetch variant is only a marginal win.)
# ---------------------------------------------------------------------------
def _scaled_elem_kernel(scale_ref, x_ref, delta_ref, rnd_ref, o_ref):
    scale = scale_ref[0]
    x = x_ref[...].astype(jnp.float32)
    new_input = jnp.clip(delta_ref[...].astype(jnp.float32),
                         -2000.0, 2000.0) * INV_FACTOR + x
    o_ref[...] = jnp.clip(new_input + rnd_ref[...].astype(jnp.float32) * scale,
                          CLAMP_LO, CLAMP_HI)


def _tiled_call(x2, d2, r2, scale, block_shape, index_map, grid, vmem_limit):
    tile_spec = pl.BlockSpec(block_shape, index_map)
    return pl.pallas_call(
        _scaled_elem_kernel,
        out_shape=jax.ShapeDtypeStruct(x2.shape, jnp.float32),
        grid=grid,
        in_specs=[pl.BlockSpec(memory_space=pltpu.MemorySpace.SMEM),
                  tile_spec, tile_spec, tile_spec],
        out_specs=tile_spec,
        compiler_params=pltpu.CompilerParams(
            dimension_semantics=("parallel",),        # shards across v7x's 2 TCs
            vmem_limit_bytes=int(vmem_limit)),
    )(scale, x2, d2, r2)


# ---------------------------------------------------------------------------
# Public forward
# ---------------------------------------------------------------------------
def noise_model_forward(x, noise_param, rnd, *, force_tiled=False):
    """x, noise_param, rnd: same-shape arrays -> same-shape float32 output."""
    assert x.shape == noise_param.shape == rnd.shape
    orig_shape = x.shape
    n = int(x.size)
    cap = _vmem_capacity_bytes()

    # ---- choose a copy-free 2D view -------------------------------------
    sliced_tail = 0
    if n % LANE == 0:
        shape2d = (n // LANE, LANE)          # lane-dense, zero-copy reshape
        lane_dense = True
    else:
        if len(orig_shape) >= 2:
            d0 = 1
            for s in orig_shape[:-1]:
                d0 *= int(s)
            shape2d = (d0, int(orig_shape[-1]))
        else:
            shape2d = (1, n)
        lane_dense = False
        # Rare fallback: leading dim so large that a (d0, 128) column tile
        # would blow the tile budget -> accept one pad copy to a dense slab.
        if _round_up(shape2d[0], SUBLANE) * LANE * 4 > _TILE_BYTES:
            sliced_tail = _round_up(n, LANE) - n
            shape2d = (_round_up(n, LANE) // LANE, LANE)
            lane_dense = True

    def to2d(a):
        flat = a.reshape(-1)
        if sliced_tail:
            flat = jnp.pad(flat, (0, sliced_tail))   # zeros are energy-neutral
        return flat.reshape(shape2d)

    x2, d2, r2 = (to2d(a) for a in (x, noise_param, rnd))

    # ---- fused vs two-pass decision (VMEM-resident footprint, padded) ----
    foot = _round_up(shape2d[0], SUBLANE) * _round_up(shape2d[1], LANE) * 4
    fused_per_operand_budget = cap // 8      # 4 resident operands -> <= VMEM/2
    use_fused = (not force_tiled) and foot <= fused_per_operand_budget

    if use_fused:
        fused_limit = min(cap - (4 << 20), cap // 2 + (8 << 20))
        out2 = _fused_call(x2, d2, r2, fused_limit)
    else:
        # Pass 1: energies on the original (un-padded) data, reduced by XLA.
        xf = x.reshape(-1).astype(jnp.float32)
        rf = rnd.reshape(-1).astype(jnp.float32)
        data_energy = jnp.sum(xf * xf)
        noise_energy = jnp.sum(rf * rf)
        scale = (NOISE_LEVEL * data_energy / noise_energy
                 ).reshape(1).astype(jnp.float32)

        # Pass 2: tiled elementwise stream, ~2 MiB per operand per step.
        if lane_dense:
            rows = shape2d[0]
            tile_rows = min(_TILE_BYTES // (LANE * 4),      # 4096 rows = 2 MiB
                            _round_up(rows, SUBLANE))
            block_shape = (tile_rows, LANE)
            index_map = lambda i: (i, 0)
            grid = (_cdiv(rows, tile_rows),)                # last block masked
        else:
            d0, d1 = shape2d
            d0p = _round_up(d0, SUBLANE)
            tile_cols = max(LANE, (_TILE_BYTES // (d0p * 4)) // LANE * LANE)
            tile_cols = min(tile_cols, _round_up(d1, LANE))
            block_shape = (d0, tile_cols)
            index_map = lambda i: (0, i)
            grid = (_cdiv(d1, tile_cols),)                  # last block masked

        # 4 operands x 2 buffers x ~2 MiB fits; raise past v5e's 16 MiB default.
        vmem_limit = min(cap // 2, 64 << 20)
        out2 = _tiled_call(x2, d2, r2, scale, block_shape, index_map, grid,
                           vmem_limit)

    if sliced_tail:
        return out2.reshape(-1)[:n].reshape(orig_shape)
    return out2.reshape(orig_shape)


def noise_model_reference(x, noise_param, rnd):
    apply_delta = jnp.clip(noise_param, -2000.0, 2000.0) * RESCALE
    new_input = apply_delta / FACTOR + x
    noise_energy = jnp.sum(rnd * rnd)
    data_energy = jnp.sum(x * x)
    noise = NOISE_LEVEL * rnd * data_energy / noise_energy
    return jnp.clip(new_input + noise, CLAMP_LO, CLAMP_HI)


if __name__ == "__main__":
    # TODO(synk): torch's in-forward RNG (noise.data.normal_(0, std=2)) is drawn
    # outside the kernel with jax.random (no in-kernel RNG needed for parity).
    def _check(batch_size, maxlen, key, random_param, force_tiled=False,
               rtol=1e-5, atol=1e-3):
        k_x, k_p, k_rnd = jax.random.split(key, 3)
        x = jax.random.normal(k_x, (batch_size, maxlen), dtype=jnp.float32) * 100.0
        if random_param:
            # exercise the +/-2000 clamp on the learned noise parameter
            noise_param = jax.random.normal(
                k_p, (batch_size, maxlen), dtype=jnp.float32) * 1500.0
        else:
            # nn.Parameter(torch.zeros(batch_size, maxlen)) — zeros init
            noise_param = jnp.zeros((batch_size, maxlen), dtype=jnp.float32)
        rnd = jax.random.normal(k_rnd, (batch_size, maxlen), dtype=jnp.float32) * 2.0
        out = jax.block_until_ready(
            noise_model_forward(x, noise_param, rnd, force_tiled=force_tiled))
        ref = noise_model_reference(x, noise_param, rnd)
        assert out.shape == (batch_size, maxlen)
        assert jnp.allclose(out, ref, rtol=rtol, atol=atol), \
            f"mismatch vs reference at ({batch_size},{maxlen}), tiled={force_tiled}"

    key = jax.random.PRNGKey(0)
    ks = jax.random.split(key, 5)

    # module-sized: fused, lane-dense (16,128) zero-copy view
    _check(2, 1024, ks[0], random_param=False)
    # non-128-aligned: fused, original (3,100) full block (no padding copy)
    _check(3, 100, ks[1], random_param=True)
    # large: single-pass fused path (f32 reduction-order => looser tolerance)
    _check(2, 400000, ks[2], random_param=True, rtol=1e-4, atol=1e-2)
    # forced two-pass: lane-dense tiles (4096,128), grid=2, masked tail block
    _check(2, 400000, ks[3], random_param=True, force_tiled=True,
           rtol=1e-4, atol=1e-2)
    # forced two-pass, non-aligned: (2, tile_cols) blocks over the last dim
    _check(2, 100000, ks[4], random_param=True, force_tiled=True,
           rtol=1e-4, atol=1e-2)

    print("KERNEL_OK")
</pallas_src>

<mosaic_0001>
module attributes {stable_mosaic.version = 11 : i64} {
  func.func @_fused_kernel(%arg0: memref<16x128xf32, #tpu.memory_space<vmem>>, %arg1: memref<16x128xf32, #tpu.memory_space<vmem>>, %arg2: memref<16x128xf32, #tpu.memory_space<vmem>>, %arg3: memref<16x128xf32, #tpu.memory_space<vmem>>) attributes {dimension_semantics = [], scalar_prefetch = 0 : i64, scratch_operands = 0 : i64, tpu.core_type = #tpu.core_type<tc>} {
    %c0 = arith.constant 0 : index
    %c0_0 = arith.constant 0 : index
    %0 = vector.load %arg0[%c0, %c0_0] : memref<16x128xf32, #tpu.memory_space<vmem>>, vector<16x128xf32>
    %c0_1 = arith.constant 0 : index
    %c0_2 = arith.constant 0 : index
    %1 = vector.load %arg2[%c0_1, %c0_2] : memref<16x128xf32, #tpu.memory_space<vmem>>, vector<16x128xf32>
    %c0_3 = arith.constant 0 : index
    %c0_4 = arith.constant 0 : index
    %2 = vector.load %arg1[%c0_3, %c0_4] : memref<16x128xf32, #tpu.memory_space<vmem>>, vector<16x128xf32>
    %cst = arith.constant -2.000000e+03 : f32
    %cst_5 = arith.constant 2.000000e+03 : f32
    %3 = vector.broadcast %cst : f32 to vector<16x128xf32>
    %4 = arith.maximumf %3, %2 : vector<16x128xf32>
    %5 = vector.broadcast %cst_5 : f32 to vector<16x128xf32>
    %6 = arith.minimumf %5, %4 : vector<16x128xf32>
    %cst_6 = arith.constant 0.0166666675 : f32
    %7 = vector.broadcast %cst_6 : f32 to vector<16x128xf32>
    %8 = arith.mulf %6, %7 : vector<16x128xf32>
    %9 = arith.addf %8, %0 : vector<16x128xf32>
    %10 = arith.mulf %0, %0 : vector<16x128xf32>
    %11 = vector.shape_cast %10 : vector<16x128xf32> to vector<1x16x128xf32>
    %cst_7 = arith.constant dense<0.000000e+00> : vector<1xf32>
    %12 = vector.multi_reduction <add>, %11, %cst_7 [1, 2] : vector<1x16x128xf32> to vector<1xf32>
    %13 = vector.shape_cast %12 : vector<1xf32> to vector<1x1x1xf32>
    %14 = vector.extract %13[0, 0, 0] : f32 from vector<1x1x1xf32>
    %cst_8 = arith.constant 1.000000e+00 : f32
    %15 = arith.mulf %cst_8, %14 : f32
    %16 = arith.mulf %1, %1 : vector<16x128xf32>
    %17 = vector.shape_cast %16 : vector<16x128xf32> to vector<1x16x128xf32>
    %cst_9 = arith.constant dense<0.000000e+00> : vector<1xf32>
    %18 = vector.multi_reduction <add>, %17, %cst_9 [1, 2] : vector<1x16x128xf32> to vector<1xf32>
    %19 = vector.shape_cast %18 : vector<1xf32> to vector<1x1x1xf32>
    %20 = vector.extract %19[0, 0, 0] : f32 from vector<1x1x1xf32>
    %21 = arith.divf %15, %20 : f32
    %22 = vector.broadcast %21 : f32 to vector<16x128xf32>
    %23 = arith.mulf %1, %22 : vector<16x128xf32>
    %24 = arith.addf %9, %23 : vector<16x128xf32>
    %cst_10 = arith.constant -3.276800e+04 : f32
    %cst_11 = arith.constant 3.276700e+04 : f32
    %25 = vector.broadcast %cst_10 : f32 to vector<16x128xf32>
    %26 = arith.maximumf %25, %24 : vector<16x128xf32>
    %27 = vector.broadcast %cst_11 : f32 to vector<16x128xf32>
    %28 = arith.minimumf %27, %26 : vector<16x128xf32>
    %c0_12 = arith.constant 0 : index
    %c0_13 = arith.constant 0 : index
    %29 = vector.load %arg3[%c0_12, %c0_13] : memref<16x128xf32, #tpu.memory_space<vmem>>, vector<16x128xf32>
    tpu.vector_store %arg3[%c0_12, %c0_13], %28 {strides = array<i32>} : memref<16x128xf32, #tpu.memory_space<vmem>>, vector<16x128xf32>,
    return
  }
}

</mosaic_0001>

<llo_original>
// kernel: tpu_custom_call.1
$region0: #{tpu_custom_call.1}
  #allocation0 [shape = 'u32[]', space=smem, size = 0x4, offset = 0x4, fixed_abs, tag = 'smem constant byte address 0x4 - core index']
  #allocation1 [shape = 'u32[144,128]{1,0:T(1,128)}', space=vmem, size = 0x12000, scoped, tag = 'internal scratch']
  %s0 = inlined_call_operand.hbm [shape: f32[16,128], index: 0, kind: input, shape index: {}]
  %s1 = inlined_call_operand.hbm [shape: f32[16,128], index: 1, kind: input, shape index: {}]
  %s2 = inlined_call_operand.hbm [shape: f32[16,128], index: 2, kind: input, shape index: {}]
  %s3 = inlined_call_operand.hbm [shape: f32[16,128], index: 3, kind: output, shape index: {}]
  %s4 = sld [smem:[#allocation0]]
  $region34: #{tpu_custom_call.1} parent=0
    _
  %s6 = ssub.s32 1, %s4
  %s7 = scalar_select 0, %s6, %s4
  $region1: #{tpu_custom_call.1} parent=0
    #allocation2 [shape = 'u8[8192]{0}', space=vmem, size = 0x2000, scoped, tag = 'input window, operand 0, single buffered']
    #allocation3 [shape = 's32[1]{0}', space=sflag, size = 0x4, scoped, tag = 'scoped memory for tpu_custom_call.1']
    #allocation4 [shape = 's32[1]{0}', space=sflag, size = 0x4, scoped, tag = 'scoped memory for tpu_custom_call.1']
    #allocation5 [shape = 'u8[8192]{0}', space=vmem, size = 0x2000, scoped, tag = 'input window, operand 1, single buffered']
    #allocation6 [shape = 's32[1]{0}', space=sflag, size = 0x4, scoped, tag = 'scoped memory for tpu_custom_call.1']
    #allocation7 [shape = 'u8[8192]{0}', space=vmem, size = 0x2000, scoped, tag = 'input window, operand 2, single buffered']
    #allocation8 [shape = 'u8[8192]{0}', space=vmem, size = 0x2000, scoped, tag = 'output window, operand 0, single buffered']
    %8 = vsyncpa [#allocation3], 0
    %9 = vsyncpa [#allocation6], 0
    %10 = vsyncpa [#allocation4], 0
    // Predicated region
    $region2: #{tpu_custom_call.1} parent=1 // pred_check
      _
    $region3: #{tpu_custom_call.1} parent=1 // pred_check_branch
      %12 = sbr.rel (0) target = $region5
    $region4: #{tpu_custom_call.1} parent=1 // pred_region
      %s14 = ssub.s32 256, 256
      %15 = vsyncadd [#allocation3], %s14
      %s16 = sshll.u32 [#allocation2], 4
      %s17 = int_to_ptr.vmem [resolvable:$true] %s16
      %22 = dma.hbm_to_vmem [thread:$0]  %s0, 256, %s17, [#allocation3], 128, 128, 8
    $region5: #{tpu_custom_call.1} parent=1 // pred_fallthru
      _
    // Predicated region
    $region6: #{tpu_custom_call.1} parent=1 // pred_check
      _
    $region7: #{tpu_custom_call.1} parent=1 // pred_check_branch
      %24 = sbr.rel (0) target = $region9
    $region8: #{tpu_custom_call.1} parent=1 // pred_region
      %s26 = ssub.s32 256, 256
      %27 = vsyncadd [#allocation6], %s26
      %s28 = sshll.u32 [#allocation5], 4
      %s29 = int_to_ptr.vmem [resolvable:$true] %s28
      %34 = dma.hbm_to_vmem [thread:$0]  %s1, 256, %s29, [#allocation6], 128, 128, 8
    $region9: #{tpu_custom_call.1} parent=1 // pred_fallthru
      _
    // Predicated region
    $region10: #{tpu_custom_call.1} parent=1 // pred_check
      _
    $region11: #{tpu_custom_call.1} parent=1 // pred_check_branch
      %36 = sbr.rel (0) target = $region13
    $region12: #{tpu_custom_call.1} parent=1 // pred_region
      %s38 = ssub.s32 256, 256
      %39 = vsyncadd [#allocation6], %s38
      %s40 = sshll.u32 [#allocation7], 4
      %s41 = int_to_ptr.vmem [resolvable:$true] %s40
      %46 = dma.hbm_to_vmem [thread:$0]  %s2, 256, %s41, [#allocation6], 128, 128, 8
    $region13: #{tpu_custom_call.1} parent=1 // pred_fallthru
      _
    // Predicated region
    $region14: #{tpu_custom_call.1} parent=1 // pred_check
      _
    $region15: #{tpu_custom_call.1} parent=1 // pred_check_branch
      %48 = sbr.rel (0) target = $region17
    $region16: #{tpu_custom_call.1} parent=1 // pred_region
      %49 = dma.done [#allocation3], 256
    $region17: #{tpu_custom_call.1} parent=1 // pred_fallthru
      _
    // Predicated region
    $region18: #{tpu_custom_call.1} parent=1 // pred_check
      _
    $region19: #{tpu_custom_call.1} parent=1 // pred_check_branch
      %51 = sbr.rel (0) target = $region21
    $region20: #{tpu_custom_call.1} parent=1 // pred_region
      %52 = dma.done [#allocation6], 256
    $region21: #{tpu_custom_call.1} parent=1 // pred_fallthru
      _
    // Predicated region
    $region22: #{tpu_custom_call.1} parent=1 // pred_check
      _
    $region23: #{tpu_custom_call.1} parent=1 // pred_check_branch
      %54 = sbr.rel (0) target = $region25
    $region24: #{tpu_custom_call.1} parent=1 // pred_region
      %55 = dma.done [#allocation6], 256
    $region25: #{tpu_custom_call.1} parent=1 // pred_fallthru
      _
    %v56 = vld [vmem:[#allocation2] sm:$0xff]
    %v57 = vld [vmem:[#allocation2 + $0x8] sm:$0xff]
    %v58 = vld [vmem:[#allocation7] sm:$0xff]
    %v59 = vld [vmem:[#allocation7 + $0x8] sm:$0xff]
    %v60 = vld [vmem:[#allocation5] sm:$0xff]
    %v61 = vld [vmem:[#allocation5 + $0x8] sm:$0xff]
    %v62 = vmax.f32 %v60, -2000.0
    %v63 = vmax.f32 %v61, -2000.0
    %v64 = vmin.f32 %v62, 2000.0
    %v65 = vmin.f32 %v63, 2000.0
    %v66 = vmul.f32 %v64, 0.016666668
    %v67 = vmul.f32 %v65, 0.016666668
    %v68 = vadd.f32 %v66, %v56
    %v69 = vadd.f32 %v67, %v57
    %v70 = vmul.f32 %v56, %v56
    %v71 = vmul.f32 %v57, %v57
    %v72 = vadd.f32 %v70, %v71
    %73 = vadd.xlane.f32.xlu0 %v72
    %v74 = vpop.xlane.xlu0 %73
    %v75 = vrot.slane %v74, 4
    %v76 = vadd.f32 %v74, %v75
    %v77 = vrot.slane %v76, 2
    %v78 = vadd.f32 %v76, %v77
    %v79 = vrot.slane %v78, 1
    %v80 = vadd.f32 %v78, %v79
    %s81 = vtos %v80
    %v82 = vmul.f32 %v58, %v58
    %v83 = vmul.f32 %v59, %v59
    %v84 = vadd.f32 %v82, %v83
    %85 = vadd.xlane.f32.xlu0 %v84
    %v86 = vpop.xlane.xlu0 %85
    %v87 = vrot.slane %v86, 4
    %v88 = vadd.f32 %v86, %v87
    %v89 = vrot.slane %v88, 2
    %v90 = vadd.f32 %v88, %v89
    %v91 = vrot.slane %v90, 1
    %v92 = vadd.f32 %v90, %v91
    %s93 = vtos %v92
    %v94 = vstv %s93
    %v95 = vrcp.pop %v94
    %s96 = vtos %v95
    %s97 = smul.f32 %s81, %s96
    %v98 = vstv %s97
    %v99 = vmul.f32 %v58, %v98
    %v100 = vmul.f32 %v59, %v98
    %v101 = vadd.f32 %v68, %v99
    %v102 = vadd.f32 %v69, %v100
    %v103 = vmax.f32 %v101, -32768.0
    %v104 = vmax.f32 %v102, -32768.0
    %v105 = vmin.f32 %v103, 32767.0
    %v106 = vmin.f32 %v104, 32767.0
    %107 = vst [vmem:[#allocation8] sm:$0xff] %v105
    %108 = vst [vmem:[#allocation8 + $0x8] sm:$0xff] %v106
    // Predicated region
    $region26: #{tpu_custom_call.1} parent=1 // pred_check
      _
    $region27: #{tpu_custom_call.1} parent=1 // pred_check_branch
      %110 = sbr.rel (0) target = $region29
    $region28: #{tpu_custom_call.1} parent=1 // pred_region
      %s112 = ssub.s32 256, 256
      %113 = vsyncadd [#allocation4], %s112
      %s114 = sshll.u32 [#allocation8], 4
      %s115 = int_to_ptr.vmem [resolvable:$true] %s114
      %120 = dma.vmem_to_hbm [thread:$0]  %s115, 256, %s3, [#allocation4], 128, 128, 8
    $region29: #{tpu_custom_call.1} parent=1 // pred_fallthru
      _
    // Predicated region
    $region30: #{tpu_custom_call.1} parent=1 // pred_check
      _
    $region31: #{tpu_custom_call.1} parent=1 // pred_check_branch
      %122 = sbr.rel (0) target = $region33
    $region32: #{tpu_custom_call.1} parent=1 // pred_region
      %123 = dma.done [#allocation4], 256
    $region33: #{tpu_custom_call.1} parent=1 // pred_fallthru
      _
    %124 = vsyncpa [#allocation3], 1
    %125 = vsyncpa [#allocation6], 1
    %126 = vsyncpa [#allocation4], 1

</llo_original>
